<compile_context>
chip_gen: v6e
topology: v6e:2x2x1
jax: 0.10.0
libtpu: 0.0.40
codegen_flags: <defaults>
</compile_context>

<pallas_src>
import math
from functools import partial

import jax
import jax.numpy as jnp
from jax.experimental import pallas as pl
from jax.experimental.pallas import tpu as pltpu


def _round_up(x, m):
    return (x + m - 1) // m * m


def _pick_tile(n, *, cap, align_multi, align_single=8):
    """Largest tile <= cap with minimal padding.

    If a single block covers the (lightly padded) axis, return the full padded
    extent (the 'equal to full array dim' exception applies).  Otherwise split
    into the fewest blocks <= cap, each a multiple of `align_multi`.
    """
    ns = _round_up(n, align_single)
    if ns <= cap:
        return ns
    n_al = _round_up(n, align_multi)
    num = -(-n_al // cap)                      # ceil
    return _round_up(-(-n_al // num), align_multi)


# ------------------------- fused GCN forward kernel -------------------------
def _gcn_fused_kernel(adj_ref, x_ref, w_ref, b_ref, out_ref):
    # grid = (row_tiles, f_out_tiles, k_tiles); reduction (k) axis is last.
    k = pl.program_id(2)

    @pl.when(k == 0)
    def _():
        out_ref[...] = jnp.zeros_like(out_ref)

    # Fused linear: support_k = x_k @ W + b, recomputed per k-tile so `support`
    # never touches HBM.  Accumulate in f32 on the MXU, add the f32 bias, then
    # cast to the adj streaming dtype (bf16 by default) so the big adj matmul
    # runs on the fast bf16 x bf16 MXU path with f32 accumulation.
    sup = jnp.dot(x_ref[...], w_ref[...], preferred_element_type=jnp.float32)
    sup = (sup + b_ref[...]).astype(adj_ref.dtype)
    out_ref[...] += jnp.dot(adj_ref[...], sup,
                            preferred_element_type=jnp.float32)


@partial(jax.jit, static_argnames=("tile_m", "tile_k", "tile_f", "compute_dtype"))
def graph_convolution(x, adj, weight, bias, *, tile_m=None, tile_k=None,
                      tile_f=None, compute_dtype=jnp.bfloat16):
    """GCN layer forward: adj @ (x @ weight.T + bias).

    x:      [N, F_in]      node features
    adj:    [N, N]         dense adjacency
    weight: [F_out, F_in]  nn.Linear layout
    bias:   [F_out]
    compute_dtype: streaming/MXU dtype for adj, x and W (bf16 default -- exact
        for 0/1 adjacencies; it rounds feature/weight/normalized-adjacency
        values to bf16.  Pass jnp.float32 for a fully exact path).
    Explicit tile_m must be a multiple of 8; tile_k / tile_f multiples of 128
    (unless they cover the full padded axis).
    Returns [N, F_out] in x.dtype.
    """
    n, f_in = x.shape
    f_out = weight.shape[0]
    out_dtype = x.dtype

    # ---- wrapper-side layout plumbing (keeps the kernel lane-dense) ----
    tf = tile_f if tile_f is not None else _pick_tile(
        f_out, cap=512, align_multi=128, align_single=128)
    f_out_p = _round_up(f_out, tf)                       # lane-dense output
    w_t = jnp.pad(weight.T.astype(compute_dtype),        # [F_in, F_out_p]
                  ((0, 0), (0, f_out_p - f_out)))
    b2d = jnp.pad(bias.astype(jnp.float32).reshape(1, f_out),
                  ((0, 0), (0, f_out_p - f_out)))

    # ---- tiles + independent rectangular padding (rows vs reduction cols) ----
    tm = tile_m if tile_m is not None else _pick_tile(
        n, cap=1024, align_multi=8, align_single=8)
    if tile_m is None and _round_up(n, tm) == tm and tm >= 256 and tm % 16 == 0:
        tm //= 2        # >=2 row tiles so both v7x TensorCores get work
    tk = tile_k if tile_k is not None else _pick_tile(
        n, cap=1024, align_multi=128, align_single=8)

    n_rows = _round_up(n, tm)
    n_cols = _round_up(n, tk)

    # Zero-pad: padded adj columns are zero, so padded support rows (which do
    # carry the bias) contribute nothing; padded output rows/cols are sliced.
    x_p = jnp.pad(x.astype(compute_dtype), ((0, n_cols - n), (0, 0)))
    adj_p = jnp.pad(adj.astype(compute_dtype),
                    ((0, n_rows - n), (0, n_cols - n)))

    # Per-step VMEM estimate (double-buffered inputs + resident f32 out block);
    # set an explicit limit so bigger tiles clear v5e's 16 MiB default while
    # staying far below v7x's 64 MiB physical VMEM.
    bc = jnp.dtype(compute_dtype).itemsize
    vmem_est = (2 * tm * tk * bc + 2 * tk * f_in * bc + 2 * f_in * tf * bc
                + 2 * tf * 4 + 2 * tm * tf * 4)
    vmem_limit = int(min(48 * 1024 * 1024,
                         max(32 * 1024 * 1024, 2 * vmem_est)))

    grid = (n_rows // tm, f_out_p // tf, n_cols // tk)

    out_p = pl.pallas_call(
        _gcn_fused_kernel,
        out_shape=jax.ShapeDtypeStruct((n_rows, f_out_p), jnp.float32),
        grid=grid,
        in_specs=[
            pl.BlockSpec((tm, tk), lambda i, j, k: (i, k)),      # adj tile
            pl.BlockSpec((tk, f_in), lambda i, j, k: (k, 0)),    # x tile
            pl.BlockSpec((f_in, tf), lambda i, j, k: (0, j)),    # W (resident)
            pl.BlockSpec((1, tf), lambda i, j, k: (0, j)),       # bias
        ],
        out_specs=pl.BlockSpec((tm, tf), lambda i, j, k: (i, j)),
        compiler_params=pltpu.CompilerParams(
            dimension_semantics=("parallel", "parallel", "arbitrary"),
            vmem_limit_bytes=vmem_limit),
    )(adj_p, x_p, w_t, b2d)

    return out_p[:n, :f_out].astype(out_dtype)


# --------------------------------- tests ------------------------------------
if __name__ == "__main__":
    def init_params(k, f_in, f_out):
        kw, kb = jax.random.split(k)
        stdv = 1.0 / math.sqrt(f_in)
        w = jax.random.uniform(kw, (f_out, f_in), minval=-stdv, maxval=stdv,
                               dtype=jnp.float32)
        b = jax.random.uniform(kb, (f_out,), minval=-stdv, maxval=stdv,
                               dtype=jnp.float32)
        return w, b

    def ref_forward(x, adj, w, b):
        return adj @ (x @ w.T + b)

    def ref_forward_bf16(x, adj, w, b):
        # Emulates the default compute_dtype=bf16 rounding of the kernel.
        f32, bf16 = jnp.float32, jnp.bfloat16
        sup = x.astype(bf16).astype(f32) @ w.T.astype(bf16).astype(f32) + b
        sup = sup.astype(bf16).astype(f32)
        return adj.astype(bf16).astype(f32) @ sup

    key = jax.random.PRNGKey(0)
    k1, k2, k3 = jax.random.split(key, 3)

    # --- Test 1: module-sized toy problem (N=16 nodes, 8 -> 32 features) ---
    N, F_IN, F_OUT = 16, 8, 32
    kx, kadj, kp = jax.random.split(k1, 3)
    x = jax.random.normal(kx, (N, F_IN), dtype=jnp.float32)
    adj = (jax.random.uniform(kadj, (N, N)) < 0.3).astype(jnp.float32)
    weight, bias = init_params(kp, F_IN, F_OUT)

    out_exact = jax.block_until_ready(
        graph_convolution(x, adj, weight, bias, compute_dtype=jnp.float32))
    assert out_exact.shape == (N, F_OUT)
    assert jnp.allclose(out_exact, ref_forward(x, adj, weight, bias),
                        atol=1e-3, rtol=1e-3)

    out_fast = jax.block_until_ready(graph_convolution(x, adj, weight, bias))
    assert jnp.allclose(out_fast, ref_forward_bf16(x, adj, weight, bias),
                        atol=5e-2, rtol=5e-2)

    # --- Test 2: multi-tile grid in row + reduction axes (explicit tiles) ---
    N2, F_IN2, F_OUT2 = 256, 64, 96
    kx2, kadj2, kp2 = jax.random.split(k2, 3)
    x2 = jax.random.normal(kx2, (N2, F_IN2), dtype=jnp.float32)
    adj2 = (jax.random.uniform(kadj2, (N2, N2)) < 0.1).astype(jnp.float32)
    w2, b2 = init_params(kp2, F_IN2, F_OUT2)

    out2 = jax.block_until_ready(
        graph_convolution(x2, adj2, w2, b2, tile_m=128, tile_k=128,
                          compute_dtype=jnp.float32))
    assert out2.shape == (N2, F_OUT2)
    assert jnp.allclose(out2, ref_forward(x2, adj2, w2, b2),
                        atol=1e-3, rtol=1e-3)

    out2_fast = jax.block_until_ready(
        graph_convolution(x2, adj2, w2, b2, tile_m=128, tile_k=128))
    assert jnp.allclose(out2_fast, ref_forward_bf16(x2, adj2, w2, b2),
                        atol=5e-2, rtol=5e-2)

    # --- Test 3: wide output features exercises the f_out grid axis ---
    N3, F_IN3, F_OUT3 = 64, 32, 640
    kx3, kadj3, kp3 = jax.random.split(k3, 3)
    x3 = jax.random.normal(kx3, (N3, F_IN3), dtype=jnp.float32)
    adj3 = (jax.random.uniform(kadj3, (N3, N3)) < 0.2).astype(jnp.float32)
    w3, b3 = init_params(kp3, F_IN3, F_OUT3)

    out3 = jax.block_until_ready(
        graph_convolution(x3, adj3, w3, b3, compute_dtype=jnp.float32))
    assert out3.shape == (N3, F_OUT3)
    assert jnp.allclose(out3, ref_forward(x3, adj3, w3, b3),
                        atol=1e-3, rtol=1e-3)

    print("KERNEL_OK")
</pallas_src>

<mosaic_0001>
module attributes {stable_mosaic.version = 11 : i64} {
  func.func @_gcn_fused_kernel(%arg0: i32, %arg1: i32, %arg2: i32, %arg3: memref<16x16xf32, #tpu.memory_space<vmem>>, %arg4: memref<16x8xf32, #tpu.memory_space<vmem>>, %arg5: memref<8x128xf32, #tpu.memory_space<vmem>>, %arg6: memref<1x128xf32, #tpu.memory_space<vmem>>, %arg7: memref<16x128xf32, #tpu.memory_space<vmem>>) attributes {dimension_semantics = [#tpu.dimension_semantics<parallel>, #tpu.dimension_semantics<parallel>, #tpu.dimension_semantics<arbitrary>], iteration_bounds = array<i64: 1, 1, 1>, scalar_prefetch = 0 : i64, scratch_operands = 0 : i64, tpu.core_type = #tpu.core_type<tc>, window_params = [{transform_indices = @transform_0, window_bounds = array<i64: 16, 16>}, {transform_indices = @transform_1, window_bounds = array<i64: 16, 8>}, {transform_indices = @transform_2, window_bounds = array<i64: 8, 128>}, {transform_indices = @transform_3, window_bounds = array<i64: 1, 128>}, {transform_indices = @transform_4, window_bounds = array<i64: 16, 128>}]} {
    %c0_i32 = arith.constant 0 : i32
    %0 = arith.cmpi eq, %arg2, %c0_i32 : i32
    %1 = arith.extui %0 : i1 to i32
    %c0_i32_0 = arith.constant 0 : i32
    %2 = arith.cmpi ne, %1, %c0_i32_0 : i32
    scf.if %2 {
      %cst_13 = arith.constant 0.000000e+00 : f32
      %14 = vector.broadcast %cst_13 : f32 to vector<16x128xf32>
      %c0_14 = arith.constant 0 : index
      %c0_15 = arith.constant 0 : index
      %15 = vector.load %arg7[%c0_14, %c0_15] : memref<16x128xf32, #tpu.memory_space<vmem>>, vector<16x128xf32>
      tpu.vector_store %arg7[%c0_14, %c0_15], %14 {strides = array<i32>} : memref<16x128xf32, #tpu.memory_space<vmem>>, vector<16x128xf32>,
    } else {
    }
    %c0 = arith.constant 0 : index
    %c0_1 = arith.constant 0 : index
    %3 = vector.load %arg4[%c0, %c0_1] : memref<16x8xf32, #tpu.memory_space<vmem>>, vector<16x8xf32>
    %c0_2 = arith.constant 0 : index
    %c0_3 = arith.constant 0 : index
    %4 = vector.load %arg5[%c0_2, %c0_3] : memref<8x128xf32, #tpu.memory_space<vmem>>, vector<8x128xf32>
    %cst = arith.constant dense<0.000000e+00> : vector<16x128xf32>
    %5 = tpu.matmul %3, %4, %cst {dimension_numbers = #tpu.dot_dimension_numbers<[1], [0], [0], [1], [0, 0, 1, 1], [], []>} : vector<16x8xf32>, vector<8x128xf32>, vector<16x128xf32> -> vector<16x128xf32>
    %c0_4 = arith.constant 0 : index
    %c0_5 = arith.constant 0 : index
    %6 = vector.load %arg6[%c0_4, %c0_5] : memref<1x128xf32, #tpu.memory_space<vmem>>, vector<1x128xf32>
    %7 = vector.broadcast %6 : vector<1x128xf32> to vector<16x128xf32>
    %8 = arith.addf %5, %7 : vector<16x128xf32>
    %c0_6 = arith.constant 0 : index
    %c0_7 = arith.constant 0 : index
    %9 = vector.load %arg7[%c0_6, %c0_7] : memref<16x128xf32, #tpu.memory_space<vmem>>, vector<16x128xf32>
    %c0_8 = arith.constant 0 : index
    %c0_9 = arith.constant 0 : index
    %10 = vector.load %arg3[%c0_8, %c0_9] : memref<16x16xf32, #tpu.memory_space<vmem>>, vector<16x16xf32>
    %cst_10 = arith.constant dense<0.000000e+00> : vector<16x128xf32>
    %11 = tpu.matmul %10, %8, %cst_10 {dimension_numbers = #tpu.dot_dimension_numbers<[1], [0], [0], [1], [0, 0, 1, 1], [], []>} : vector<16x16xf32>, vector<16x128xf32>, vector<16x128xf32> -> vector<16x128xf32>
    %12 = arith.addf %9, %11 : vector<16x128xf32>
    %c0_11 = arith.constant 0 : index
    %c0_12 = arith.constant 0 : index
    %13 = vector.load %arg7[%c0_11, %c0_12] : memref<16x128xf32, #tpu.memory_space<vmem>>, vector<16x128xf32>
    tpu.vector_store %arg7[%c0_11, %c0_12], %12 {strides = array<i32>} : memref<16x128xf32, #tpu.memory_space<vmem>>, vector<16x128xf32>,
    return
  }
  func.func @transform_0(%arg0: i32, %arg1: i32, %arg2: i32) -> (i32, i32) {
    %c0_i32 = arith.constant 0 : i32
    return %arg0, %arg2 : i32, i32
  }
  func.func @transform_1(%arg0: i32, %arg1: i32, %arg2: i32) -> (i32, i32) {
    %c0_i32 = arith.constant 0 : i32
    %c0_i32_0 = arith.constant 0 : i32
    return %arg2, %c0_i32 : i32, i32
  }
  func.func @transform_2(%arg0: i32, %arg1: i32, %arg2: i32) -> (i32, i32) {
    %c0_i32 = arith.constant 0 : i32
    %c0_i32_0 = arith.constant 0 : i32
    return %c0_i32, %arg1 : i32, i32
  }
  func.func @transform_3(%arg0: i32, %arg1: i32, %arg2: i32) -> (i32, i32) {
    %c0_i32 = arith.constant 0 : i32
    %c0_i32_0 = arith.constant 0 : i32
    return %c0_i32, %arg1 : i32, i32
  }
  func.func @transform_4(%arg0: i32, %arg1: i32, %arg2: i32) -> (i32, i32) {
    %c0_i32 = arith.constant 0 : i32
    return %arg0, %arg1 : i32, i32
  }
}

</mosaic_0001>

<llo_original>
// kernel: graph_convolution.1
$region0: #{graph_convolution.1}
  #allocation0 [shape = 'u32[]', space=smem, size = 0x4, offset = 0x4, fixed_abs, tag = 'smem constant byte address 0x4 - core index']
  #allocation1 [shape = 'u32[144,128]{1,0:T(1,128)}', space=vmem, size = 0x12000, scoped, tag = 'internal scratch']
  %s0 = inlined_call_operand.vmem [shape: f32[16,16], index: 0, kind: input, shape index: {}]
  %s1 = inlined_call_operand.vmem [shape: f32[16,8], index: 1, kind: input, shape index: {}]
  %s2 = inlined_call_operand.vmem [shape: f32[8,128], index: 2, kind: input, shape index: {}]
  %s3 = inlined_call_operand.vmem [shape: f32[1,128], index: 3, kind: input, shape index: {}]
  %s4 = inlined_call_operand.hbm [shape: f32[16,128], index: 4, kind: output, shape index: {}]
  %s5 = sld [smem:[#allocation0]]
  $region30: #{graph_convolution.1} parent=0
    _
  %s7 = ssub.s32 1, %s5
  %s8 = scalar_select 0, %s7, %s5
  $region1: #{graph_convolution.1} parent=0
    #allocation2 [shape = 'u8[8192]{0}', space=vmem, size = 0x2000, scoped, tag = 'output window, operand 0, single buffered']
    #allocation3 [shape = 's32[1]{0}', space=sflag, size = 0x4, scoped, tag = 'scoped memory for graph_convolution.1']
    %9 = vsyncpa [#allocation3], 0
    // Predicated region
    $region2: #{graph_convolution.1} parent=1 // pred_check
      _
    $region3: #{graph_convolution.1} parent=1 // pred_check_branch
      %11 = sbr.rel (0) target = $region5
    $region4: #{graph_convolution.1} parent=1 // pred_region
      _
    $region5: #{graph_convolution.1} parent=1 // pred_fallthru
      _
    // Predicated region
    $region6: #{graph_convolution.1} parent=1 // pred_check
      _
    $region7: #{graph_convolution.1} parent=1 // pred_check_branch
      %13 = sbr.rel (0) target = $region9
    $region8: #{graph_convolution.1} parent=1 // pred_region
      _
    $region9: #{graph_convolution.1} parent=1 // pred_fallthru
      _
    // Predicated region
    $region10: #{graph_convolution.1} parent=1 // pred_check
      _
    $region11: #{graph_convolution.1} parent=1 // pred_check_branch
      %15 = sbr.rel (0) target = $region13
    $region12: #{graph_convolution.1} parent=1 // pred_region
      _
    $region13: #{graph_convolution.1} parent=1 // pred_fallthru
      _
    // Predicated region
    $region14: #{graph_convolution.1} parent=1 // pred_check
      _
    $region15: #{graph_convolution.1} parent=1 // pred_check_branch
      %17 = sbr.rel (0) target = $region17
    $region16: #{graph_convolution.1} parent=1 // pred_region
      _
    $region17: #{graph_convolution.1} parent=1 // pred_fallthru
      _
    %p18 = scmp.eq.s32.totalorder 0, 0
    // Predicated region
    $region18: #{graph_convolution.1} parent=1 // pred_check
      %p19 = pneg %p18
    $region19: #{graph_convolution.1} parent=1 // pred_check_branch
      %21 = sbr.rel (%p19) target = $region21
    $region20: #{graph_convolution.1} parent=1 // pred_region
      %22 = vst [vmem:[#allocation2] sm:$0xff] 0.0
      %23 = vst [vmem:[#allocation2 + $0x8] sm:$0xff] 0.0
    $region21: #{graph_convolution.1} parent=1 // pred_fallthru
      _
    %v24 = vld [vmem:[%s1] sm:$0xff]
    %v25 = vld [vmem:[%s1 + $0x8] sm:$0xff]
    %v26 = vld [vmem:[%s2] sm:$0xff]
    %v27 = vld [vmem:[%s3] sm:$0x1]
    %v29 = vlaneseq
    %v30 = vshrl.u32 %v29, 7
    %v31 = vsub.s32 0, %v30
    %v32 = vrot.slane %v27, %v31
    %vm34 = vcmask 64512
    %v36 = vsel %vm34, %v24, 0
    %v39 = vsel %vm34, %v25, 0
    %41 = vmatprep.subr.mxu0 0.0
    %42 = vmatpush1.msra.mxu0 0.0
    %43 = vmatprep.subr.mxu0 0.0
    %44 = vmatpush1.msra.mxu0 0.0
    %45 = vmatprep.subr.mxu0 0.0
    %46 = vmatpush1.msra.mxu0 0.0
    %47 = vmatprep.subr.mxu0 0.0
    %48 = vmatpush1.msra.mxu0 0.0
    %49 = vmatprep.subr.mxu0 0.0
    %50 = vmatpush1.msra.mxu0 0.0
    %51 = vmatprep.subr.mxu0 0.0
    %52 = vmatpush1.msra.mxu0 0.0
    %53 = vmatprep.subr.mxu0 0.0
    %54 = vmatpush1.msra.mxu0 0.0
    %55 = vmatprep.subr.mxu0 0.0
    %56 = vmatpush1.msra.mxu0 0.0
    %57 = vmatprep.subr.mxu0 0.0
    %58 = vmatpush1.msra.mxu0 0.0
    %59 = vmatprep.subr.mxu0 0.0
    %60 = vmatpush1.msra.mxu0 0.0
    %61 = vmatprep.subr.mxu0 0.0
    %62 = vmatpush1.msra.mxu0 0.0
    %63 = vmatprep.subr.mxu0 0.0
    %64 = vmatpush1.msra.mxu0 0.0
    %65 = vmatprep.subr.mxu0 0.0
    %66 = vmatpush1.msra.mxu0 0.0
    %67 = vmatprep.subr.mxu0 0.0
    %68 = vmatpush1.msra.mxu0 0.0
    %69 = vmatprep.subr.mxu0 0.0
    %70 = vmatpush1.msra.mxu0 0.0
    %71 = vmatprep.subr.mxu0 0.0
    %72 = vmatpush1.msra.mxu0 %v26
    %73 = vmatprep.subr.mxu0 0.0
    %74 = vmatpush2.msra.mxu0 0.0
    %75 = vmatprep.subr.mxu0 0.0
    %76 = vmatpush2.msra.mxu0 0.0
    %77 = vmatprep.subr.mxu0 0.0
    %78 = vmatpush2.msra.mxu0 0.0
    %79 = vmatprep.subr.mxu0 0.0
    %80 = vmatpush2.msra.mxu0 0.0
    %81 = vmatprep.subr.mxu0 0.0
    %82 = vmatpush2.msra.mxu0 0.0
    %83 = vmatprep.subr.mxu0 0.0
    %84 = vmatpush2.msra.mxu0 0.0
    %85 = vmatprep.subr.mxu0 0.0
    %86 = vmatpush2.msra.mxu0 0.0
    %87 = vmatprep.subr.mxu0 0.0
    %88 = vmatpush2.msra.mxu0 0.0
    %89 = vmatprep.subr.mxu0 0.0
    %90 = vmatpush2.msra.mxu0 0.0
    %91 = vmatprep.subr.mxu0 0.0
    %92 = vmatpush2.msra.mxu0 0.0
    %93 = vmatprep.subr.mxu0 0.0
    %94 = vmatpush2.msra.mxu0 0.0
    %95 = vmatprep.subr.mxu0 0.0
    %96 = vmatpush2.msra.mxu0 0.0
    %97 = vmatprep.subr.mxu0 0.0
    %98 = vmatpush2.msra.mxu0 0.0
    %99 = vmatprep.subr.mxu0 0.0
    %100 = vmatpush2.msra.mxu0 0.0
    %101 = vmatprep.subr.mxu0 0.0
    %102 = vmatpush2.msra.mxu0 0.0
    %103 = vmatprep.subr.mxu0 0.0
    %104 = vmatpush2.msra.mxu0 0.0
    %105 = vmatprep.mubr.f32.mxu0 0.0
    %106 = vmatmul.mubr.f32.gmra.mxu0 %v36
    %v107 = vpop.f32.mrf.mxu0
    %v108 = vadd.f32 %v32, %v107
    %v109 = vpop.f32.mrf.mxu0
    %110 = vmatprep.mubr.f32.mxu0 0.0
    %111 = vmatmul.mubr.f32.gmra.mxu0 %v39
    %v112 = vpop.f32.mrf.mxu0
    %v113 = vadd.f32 %v32, %v112
    %v114 = vpop.f32.mrf.mxu0
    %115 = vdwg.mxu0
    %v116 = vld [vmem:[#allocation2] sm:$0xff]
    %v117 = vld [vmem:[#allocation2 + $0x8] sm:$0xff]
    %v118 = vld [vmem:[%s0] sm:$0xff]
    %v119 = vld [vmem:[%s0 + $0x8] sm:$0xff]
    %vm120 = vcmask 130048
    %v122 = vsel %vm120, %v118, 0
    %v125 = vsel %vm120, %v119, 0
    %127 = vmatprep.subr.mxu0 0.0
    %128 = vmatpush1.msra.mxu0 0.0
    %129 = vmatprep.subr.mxu0 0.0
    %130 = vmatpush1.msra.mxu0 0.0
    %131 = vmatprep.subr.mxu0 0.0
    %132 = vmatpush1.msra.mxu0 0.0
    %133 = vmatprep.subr.mxu0 0.0
    %134 = vmatpush1.msra.mxu0 0.0
    %135 = vmatprep.subr.mxu0 0.0
    %136 = vmatpush1.msra.mxu0 0.0
    %137 = vmatprep.subr.mxu0 0.0
    %138 = vmatpush1.msra.mxu0 0.0
    %139 = vmatprep.subr.mxu0 0.0
    %140 = vmatpush1.msra.mxu0 0.0
    %141 = vmatprep.subr.mxu0 0.0
    %142 = vmatpush1.msra.mxu0 0.0
    %143 = vmatprep.subr.mxu0 0.0
    %144 = vmatpush1.msra.mxu0 0.0
    %145 = vmatprep.subr.mxu0 0.0
    %146 = vmatpush1.msra.mxu0 0.0
    %147 = vmatprep.subr.mxu0 0.0
    %148 = vmatpush1.msra.mxu0 0.0
    %149 = vmatprep.subr.mxu0 0.0
    %150 = vmatpush1.msra.mxu0 0.0
    %151 = vmatprep.subr.mxu0 0.0
    %152 = vmatpush1.msra.mxu0 0.0
    %153 = vmatprep.subr.mxu0 0.0
    %154 = vmatpush1.msra.mxu0 0.0
    %155 = vmatprep.subr.mxu0 0.0
    %156 = vmatpush1.msra.mxu0 %v113
    %157 = vmatprep.subr.mxu0 0.0
    %158 = vmatpush1.msra.mxu0 %v108
    %159 = vmatprep.subr.mxu0 0.0
    %160 = vmatpush2.msra.mxu0 0.0
    %161 = vmatprep.subr.mxu0 0.0
    %162 = vmatpush2.msra.mxu0 0.0
    %163 = vmatprep.subr.mxu0 0.0
    %164 = vmatpush2.msra.mxu0 0.0
    %165 = vmatprep.subr.mxu0 0.0
    %166 = vmatpush2.msra.mxu0 0.0
    %167 = vmatprep.subr.mxu0 0.0
    %168 = vmatpush2.msra.mxu0 0.0
    %169 = vmatprep.subr.mxu0 0.0
    %170 = vmatpush2.msra.mxu0 0.0
    %171 = vmatprep.subr.mxu0 0.0
    %172 = vmatpush2.msra.mxu0 0.0
    %173 = vmatprep.subr.mxu0 0.0
    %174 = vmatpush2.msra.mxu0 0.0
    %175 = vmatprep.subr.mxu0 0.0
    %176 = vmatpush2.msra.mxu0 0.0
    %177 = vmatprep.subr.mxu0 0.0
    %178 = vmatpush2.msra.mxu0 0.0
    %179 = vmatprep.subr.mxu0 0.0
    %180 = vmatpush2.msra.mxu0 0.0
    %181 = vmatprep.subr.mxu0 0.0
    %182 = vmatpush2.msra.mxu0 0.0
    %183 = vmatprep.subr.mxu0 0.0
    %184 = vmatpush2.msra.mxu0 0.0
    %185 = vmatprep.subr.mxu0 0.0
    %186 = vmatpush2.msra.mxu0 0.0
    %187 = vmatprep.subr.mxu0 0.0
    %188 = vmatpush2.msra.mxu0 0.0
    %189 = vmatprep.subr.mxu0 0.0
    %190 = vmatpush2.msra.mxu0 0.0
    %191 = vmatprep.mubr.f32.mxu0 0.0
    %192 = vmatmul.mubr.f32.gmra.mxu0 %v122
    %v193 = vpop.f32.mrf.mxu0
    %v194 = vadd.f32 0.0, %v193
    %v195 = vpop.f32.mrf.mxu0
    %196 = vmatprep.mubr.f32.mxu0 0.0
    %197 = vmatmul.mubr.f32.gmra.mxu0 %v125
    %v198 = vpop.f32.mrf.mxu0
    %v199 = vadd.f32 0.0, %v198
    %v200 = vpop.f32.mrf.mxu0
    %201 = vdwg.mxu0
    %v202 = vadd.f32 %v116, %v194
    %v203 = vadd.f32 %v117, %v199
    %204 = vst [vmem:[#allocation2] sm:$0xff] %v202
    %205 = vst [vmem:[#allocation2 + $0x8] sm:$0xff] %v203
    // Predicated region
    $region22: #{graph_convolution.1} parent=1 // pred_check
      _
    $region23: #{graph_convolution.1} parent=1 // pred_check_branch
      %207 = sbr.rel (0) target = $region25
    $region24: #{graph_convolution.1} parent=1 // pred_region
      %s209 = ssub.s32 256, 256
      %210 = vsyncadd [#allocation3], %s209
      %s211 = sshll.u32 [#allocation2], 4
      %s212 = int_to_ptr.vmem [resolvable:$true] %s211
      %217 = dma.vmem_to_hbm [thread:$0]  %s212, 256, %s4, [#allocation3], 128, 128, 8
    $region25: #{graph_convolution.1} parent=1 // pred_fallthru
      _
    // Predicated region
    $region26: #{graph_convolution.1} parent=1 // pred_check
      _
    $region27: #{graph_convolution.1} parent=1 // pred_check_branch
      %219 = sbr.rel (0) target = $region29
    $region28: #{graph_convolution.1} parent=1 // pred_region
      %220 = dma.done [#allocation3], 256
    $region29: #{graph_convolution.1} parent=1 // pred_fallthru
      _
    %221 = vsyncpa [#allocation3], 1

</llo_original>
